<compile_context>
chip_gen: v7x
topology: tpu7x:2x2x1
jax: 0.10.0
libtpu: 0.0.40
codegen_flags: <defaults>
</compile_context>

<pallas_src>
import jax
import jax.numpy as jnp
from jax import lax
from jax.experimental import pallas as pl
from jax.experimental.pallas import tpu as pltpu


def _decoder_masked_kernel(x_ref, m_ref, w_ref, o_ref, acc_ref, den_ref):
    # x_ref: (TB, TT, D)  m_ref: (TB, TT, 1)  w_ref: (O, D)
    # o_ref: (TB, O)      acc_ref: (TB, D) f32   den_ref: (TB, 1) f32
    k = pl.program_id(1)

    @pl.when(k == 0)
    def _():
        acc_ref[...] = jnp.zeros_like(acc_ref)
        den_ref[...] = jnp.zeros_like(den_ref)

    x = x_ref[...].astype(jnp.float32)
    m = m_ref[...].astype(jnp.float32)          # (TB, TT, 1): lane splat over D
    acc_ref[...] += jnp.sum(x * m, axis=1)      # (TB, D) masked partial sum
    den_ref[...] += jnp.sum(m, axis=1)          # (TB, 1)

    @pl.when(k == pl.num_programs(1) - 1)
    def _():
        # pooled_sum @ W^T with W in its natural (O, D) layout (contract D on
        # both operands) -- avoids a transposed weight copy in HBM.
        out = lax.dot_general(
            acc_ref[...], w_ref[...],
            dimension_numbers=(((1,), (1,)), ((), ())),
            preferred_element_type=jnp.float32)  # (TB, O)
        # Scale the tiny (TB, O) result instead of the (TB, D) accumulator.
        # No clamp on the denominator: matches torch.div semantics exactly.
        inv = pl.reciprocal(den_ref[...], approx=False)
        o_ref[...] = (out * inv).astype(o_ref.dtype)


def _decoder_sum_kernel(x_ref, w_ref, o_ref, acc_ref):
    # x_ref: (TB, TT, D)  w_ref: (O, D)  o_ref: (TB, O)  acc_ref: (TB, D) f32
    k = pl.program_id(1)

    @pl.when(k == 0)
    def _():
        acc_ref[...] = jnp.zeros_like(acc_ref)

    acc_ref[...] += jnp.sum(x_ref[...].astype(jnp.float32), axis=1)

    @pl.when(k == pl.num_programs(1) - 1)
    def _():
        o_ref[...] = lax.dot_general(
            acc_ref[...], w_ref[...],
            dimension_numbers=(((1,), (1,)), ((), ())),
            preferred_element_type=jnp.float32).astype(o_ref.dtype)


def _pick_tile(total, target, align):
    """Largest divisor of `total` that is <= target and a multiple of `align`
    (falls back to `total`, i.e. a full-extent block)."""
    if total <= target:
        return total
    for cand in range(min(target, total), 0, -1):
        if total % cand == 0 and cand % align == 0:
            return cand
    return total


def simple_decoder(x, weight, mask=None, *, block_b=None, block_t=None,
                   x_tile_bytes=4 * 1024 * 1024):
    """Pallas equivalent of SimpleDecoder.forward.

    x:      (B, T, D) float32
    weight: (O, D) float32  (nn.Linear weight, bias=False)
    mask:   optional (B, T)
    returns (B, O) float32
    """
    B, T, D = x.shape
    O = weight.shape[0]

    # Tile sizes: out-block sublane dim must be a multiple of 8 or the full B;
    # T tiles must be multiples of 8 (D is always full-width on lanes).
    if block_b is None:
        block_b = _pick_tile(B, 8, 8)
    if block_t is None:
        row_bytes = block_b * D * x.dtype.itemsize
        block_t = _pick_tile(T, max(8, x_tile_bytes // max(row_bytes, 1)), 8)

    grid = (B // block_b, T // block_t)
    out_shape = jax.ShapeDtypeStruct((B, O), x.dtype)
    compiler_params = pltpu.CompilerParams(
        dimension_semantics=("parallel", "arbitrary"))

    x_spec = pl.BlockSpec((block_b, block_t, D), lambda i, k: (i, k, 0))
    w_spec = pl.BlockSpec((O, D), lambda i, k: (0, 0))        # resident weight
    o_spec = pl.BlockSpec((block_b, O), lambda i, k: (i, 0))  # resident per B-tile

    if mask is not None:
        mask3 = mask.astype(x.dtype)[:, :, None]              # (B, T, 1)
        cost = pl.CostEstimate(
            flops=2 * B * T * D + 2 * B * D * O,
            transcendentals=0,
            bytes_accessed=4 * (B * T * D + B * T + O * D + B * O))
        return pl.pallas_call(
            _decoder_masked_kernel,
            out_shape=out_shape,
            grid=grid,
            in_specs=[
                x_spec,
                pl.BlockSpec((block_b, block_t, 1), lambda i, k: (i, k, 0)),
                w_spec,
            ],
            out_specs=o_spec,
            scratch_shapes=[
                pltpu.VMEM((block_b, D), jnp.float32),
                pltpu.VMEM((block_b, 1), jnp.float32),
            ],
            compiler_params=compiler_params,
            cost_estimate=cost,
        )(x, mask3, weight)
    else:
        cost = pl.CostEstimate(
            flops=B * T * D + 2 * B * D * O,
            transcendentals=0,
            bytes_accessed=4 * (B * T * D + O * D + B * O))
        return pl.pallas_call(
            _decoder_sum_kernel,
            out_shape=out_shape,
            grid=grid,
            in_specs=[x_spec, w_spec],
            out_specs=o_spec,
            scratch_shapes=[pltpu.VMEM((block_b, D), jnp.float32)],
            compiler_params=compiler_params,
            cost_estimate=cost,
        )(x, weight)


def _reference(x, weight, mask=None):
    if mask is not None:
        m = mask.astype(x.dtype)
        denom = jnp.sum(m, axis=-1, keepdims=True)
        pooled = jnp.sum(x * m[:, :, None], axis=1) / denom
    else:
        pooled = jnp.sum(x, axis=1)
    return pooled @ weight.T


if __name__ == "__main__":
    key = jax.random.PRNGKey(0)

    # --- Case 1: real tiled grid (B tiles parallel, T tiles reduced) --------
    B, T, D, O = 16, 64, 128, 16
    k1, k2, k3, key = jax.random.split(key, 4)
    x = jax.random.normal(k1, (B, T, D), dtype=jnp.float32)
    weight = jax.random.uniform(
        k2, (O, D), dtype=jnp.float32,
        minval=-1.0 / jnp.sqrt(D), maxval=1.0 / jnp.sqrt(D))
    lengths = jax.random.randint(k3, (B,), 1, T + 1)
    mask = (jnp.arange(T)[None, :] < lengths[:, None]).astype(jnp.float32)

    y_masked = simple_decoder(x, weight, mask, block_b=8, block_t=16)  # grid (2, 4)
    y_sum = simple_decoder(x, weight, None, block_b=8, block_t=16)
    jax.block_until_ready((y_masked, y_sum))

    assert y_masked.shape == (B, O) and y_sum.shape == (B, O)
    assert jnp.allclose(y_masked, _reference(x, weight, mask), atol=1e-4, rtol=1e-4)
    assert jnp.allclose(y_sum, _reference(x, weight, None), atol=1e-4, rtol=1e-4)

    # --- Case 2: tiny shapes from the module spec (full-block fallback) -----
    Bs, Ts, Ds, Os = 2, 8, 32, 16
    k4, k5, key = jax.random.split(key, 3)
    xs = jax.random.normal(k4, (Bs, Ts, Ds), dtype=jnp.float32)
    ws = jax.random.uniform(
        k5, (Os, Ds), dtype=jnp.float32,
        minval=-1.0 / jnp.sqrt(Ds), maxval=1.0 / jnp.sqrt(Ds))
    lens_s = jnp.array([8, 5], dtype=jnp.int32)
    masks = (jnp.arange(Ts)[None, :] < lens_s[:, None]).astype(jnp.float32)

    ym_s = simple_decoder(xs, ws, masks)
    ys_s = simple_decoder(xs, ws, None)
    jax.block_until_ready((ym_s, ys_s))

    assert jnp.allclose(ym_s, _reference(xs, ws, masks), atol=1e-4, rtol=1e-4)
    assert jnp.allclose(ys_s, _reference(xs, ws, None), atol=1e-4, rtol=1e-4)

    print("KERNEL_OK")
</pallas_src>

<mosaic_0001>
module attributes {stable_mosaic.version = 11 : i64} {
  func.func @_decoder_masked_kernel(%arg0: i32, %arg1: i32, %arg2: memref<8x16x128xf32, #tpu.memory_space<vmem>>, %arg3: memref<8x16x1xf32, #tpu.memory_space<vmem>>, %arg4: memref<16x128xf32, #tpu.memory_space<vmem>>, %arg5: memref<8x16xf32, #tpu.memory_space<vmem>>, %arg6: memref<8x128xf32, #tpu.memory_space<vmem>>, %arg7: memref<8x1xf32, #tpu.memory_space<vmem>>) attributes {dimension_semantics = [#tpu.dimension_semantics<parallel>, #tpu.dimension_semantics<arbitrary>], iteration_bounds = array<i64: 2, 4>, scalar_prefetch = 0 : i64, scratch_operands = 2 : i64, tpu.core_type = #tpu.core_type<tc>, window_params = [{transform_indices = @transform_0, window_bounds = array<i64: 8, 16, 128>}, {transform_indices = @transform_1, window_bounds = array<i64: 8, 16, 1>}, {pipeline_mode = #tpu.pipeline_mode<synchronous>, transform_indices = @transform_2, window_bounds = array<i64: 16, 128>}, {transform_indices = @transform_3, window_bounds = array<i64: 8, 16>}]} {
    %c0_i32 = arith.constant 0 : i32
    %0 = arith.cmpi eq, %arg1, %c0_i32 : i32
    %1 = arith.extui %0 : i1 to i32
    %c0_i32_0 = arith.constant 0 : i32
    %2 = arith.cmpi ne, %1, %c0_i32_0 : i32
    scf.if %2 {
      %cst_16 = arith.constant 0.000000e+00 : f32
      %18 = vector.broadcast %cst_16 : f32 to vector<8x128xf32>
      %c0_17 = arith.constant 0 : index
      %c0_18 = arith.constant 0 : index
      %19 = vector.load %arg6[%c0_17, %c0_18] : memref<8x128xf32, #tpu.memory_space<vmem>>, vector<8x128xf32>
      tpu.vector_store %arg6[%c0_17, %c0_18], %18 {strides = array<i32>} : memref<8x128xf32, #tpu.memory_space<vmem>>, vector<8x128xf32>,
      %cst_19 = arith.constant 0.000000e+00 : f32
      %20 = vector.broadcast %cst_19 : f32 to vector<8x1xf32>
      %c0_20 = arith.constant 0 : index
      %c0_21 = arith.constant 0 : index
      %21 = vector.load %arg7[%c0_20, %c0_21] : memref<8x1xf32, #tpu.memory_space<vmem>>, vector<8x1xf32>
      tpu.vector_store %arg7[%c0_20, %c0_21], %20 {strides = array<i32>} : memref<8x1xf32, #tpu.memory_space<vmem>>, vector<8x1xf32>,
    } else {
    }
    %c0 = arith.constant 0 : index
    %c0_1 = arith.constant 0 : index
    %c0_2 = arith.constant 0 : index
    %3 = vector.load %arg2[%c0, %c0_1, %c0_2] : memref<8x16x128xf32, #tpu.memory_space<vmem>>, vector<8x16x128xf32>
    %c0_3 = arith.constant 0 : index
    %c0_4 = arith.constant 0 : index
    %c0_5 = arith.constant 0 : index
    %4 = vector.load %arg3[%c0_3, %c0_4, %c0_5] : memref<8x16x1xf32, #tpu.memory_space<vmem>>, vector<8x16x1xf32>
    %c0_6 = arith.constant 0 : index
    %c0_7 = arith.constant 0 : index
    %5 = vector.load %arg6[%c0_6, %c0_7] : memref<8x128xf32, #tpu.memory_space<vmem>>, vector<8x128xf32>
    %6 = vector.broadcast %4 : vector<8x16x1xf32> to vector<8x16x128xf32>
    %7 = arith.mulf %3, %6 : vector<8x16x128xf32>
    %cst = arith.constant dense<0.000000e+00> : vector<8x128xf32>
    %8 = vector.multi_reduction <add>, %7, %cst [1] : vector<8x16x128xf32> to vector<8x128xf32>
    %9 = arith.addf %5, %8 : vector<8x128xf32>
    %c0_8 = arith.constant 0 : index
    %c0_9 = arith.constant 0 : index
    %10 = vector.load %arg6[%c0_8, %c0_9] : memref<8x128xf32, #tpu.memory_space<vmem>>, vector<8x128xf32>
    tpu.vector_store %arg6[%c0_8, %c0_9], %9 {strides = array<i32>} : memref<8x128xf32, #tpu.memory_space<vmem>>, vector<8x128xf32>,
    %c0_10 = arith.constant 0 : index
    %c0_11 = arith.constant 0 : index
    %11 = vector.load %arg7[%c0_10, %c0_11] : memref<8x1xf32, #tpu.memory_space<vmem>>, vector<8x1xf32>
    %cst_12 = arith.constant dense<0.000000e+00> : vector<8x1xf32>
    %12 = vector.multi_reduction <add>, %4, %cst_12 [1] : vector<8x16x1xf32> to vector<8x1xf32>
    %13 = arith.addf %11, %12 : vector<8x1xf32>
    %c0_13 = arith.constant 0 : index
    %c0_14 = arith.constant 0 : index
    %14 = vector.load %arg7[%c0_13, %c0_14] : memref<8x1xf32, #tpu.memory_space<vmem>>, vector<8x1xf32>
    tpu.vector_store %arg7[%c0_13, %c0_14], %13 {strides = array<i32>} : memref<8x1xf32, #tpu.memory_space<vmem>>, vector<8x1xf32>,
    %c3_i32 = arith.constant 3 : i32
    %15 = arith.cmpi eq, %arg1, %c3_i32 : i32
    %16 = arith.extui %15 : i1 to i32
    %c0_i32_15 = arith.constant 0 : i32
    %17 = arith.cmpi ne, %16, %c0_i32_15 : i32
    scf.if %17 {
      %c0_16 = arith.constant 0 : index
      %c0_17 = arith.constant 0 : index
      %18 = vector.load %arg6[%c0_16, %c0_17] : memref<8x128xf32, #tpu.memory_space<vmem>>, vector<8x128xf32>
      %c0_18 = arith.constant 0 : index
      %c0_19 = arith.constant 0 : index
      %19 = vector.load %arg4[%c0_18, %c0_19] : memref<16x128xf32, #tpu.memory_space<vmem>>, vector<16x128xf32>
      %cst_20 = arith.constant dense<0.000000e+00> : vector<8x16xf32>
      %20 = tpu.matmul %18, %19, %cst_20 {dimension_numbers = #tpu.dot_dimension_numbers<[1], [1], [0], [0], [0, 0, 1, 0], [], []>} : vector<8x128xf32>, vector<16x128xf32>, vector<8x16xf32> -> vector<8x16xf32>
      %c0_21 = arith.constant 0 : index
      %c0_22 = arith.constant 0 : index
      %21 = vector.load %arg7[%c0_21, %c0_22] : memref<8x1xf32, #tpu.memory_space<vmem>>, vector<8x1xf32>
      %22 = tpu.reciprocal %21 : vector<8x1xf32> -> vector<8x1xf32>
      %23 = vector.broadcast %22 : vector<8x1xf32> to vector<8x16xf32>
      %24 = arith.mulf %20, %23 : vector<8x16xf32>
      %c0_23 = arith.constant 0 : index
      %c0_24 = arith.constant 0 : index
      %25 = vector.load %arg5[%c0_23, %c0_24] : memref<8x16xf32, #tpu.memory_space<vmem>>, vector<8x16xf32>
      tpu.vector_store %arg5[%c0_23, %c0_24], %24 {strides = array<i32>} : memref<8x16xf32, #tpu.memory_space<vmem>>, vector<8x16xf32>,
    } else {
    }
    return
  }
  func.func @transform_0(%arg0: i32, %arg1: i32) -> (i32, i32, i32) {
    %c0_i32 = arith.constant 0 : i32
    %c0_i32_0 = arith.constant 0 : i32
    return %arg0, %arg1, %c0_i32 : i32, i32, i32
  }
  func.func @transform_1(%arg0: i32, %arg1: i32) -> (i32, i32, i32) {
    %c0_i32 = arith.constant 0 : i32
    %c0_i32_0 = arith.constant 0 : i32
    return %arg0, %arg1, %c0_i32 : i32, i32, i32
  }
  func.func @transform_2(%arg0: i32, %arg1: i32) -> (i32, i32) {
    %c0_i32 = arith.constant 0 : i32
    %c0_i32_0 = arith.constant 0 : i32
    %c0_i32_1 = arith.constant 0 : i32
    return %c0_i32, %c0_i32_0 : i32, i32
  }
  func.func @transform_3(%arg0: i32, %arg1: i32) -> (i32, i32) {
    %c0_i32 = arith.constant 0 : i32
    %c0_i32_0 = arith.constant 0 : i32
    return %arg0, %c0_i32 : i32, i32
  }
}

</mosaic_0001>

<llo_original>
// kernel: tpu_custom_call.1
$region0: #{tpu_custom_call.1}
  #allocation0 [shape = 'u32[]', space=smem, size = 0x4, offset = 0x4, fixed_abs, tag = 'smem constant byte address 0x4 - core index']
  #allocation1 [shape = 'u32[144,128]{1,0:T(1,128)}', space=vmem, size = 0x12000, scoped, tag = 'internal scratch']
  #allocation2 [shape = 'f32[8,128]{1,0:T(8,128)}', space=vmem, size = 0x1000, scoped, tag = 'scratch operand']
  #allocation3 [shape = 'f32[8,1]{1,0:T(8,128)}', space=vmem, size = 0x1000, scoped, tag = 'scratch operand']
  %s0 = inlined_call_operand.vmem [shape: f32[16,64,128], index: 0, kind: input, shape index: {}]
  %s1 = inlined_call_operand.vmem [shape: f32[16,64,1], index: 1, kind: input, shape index: {}]
  %s2 = inlined_call_operand.vmem [shape: f32[16,128], index: 2, kind: input, shape index: {}]
  %s3 = inlined_call_operand.hbm [shape: f32[16,16], index: 3, kind: output, shape index: {}]
  %s4 = sld [smem:[#allocation0]]
  $region129: #{tpu_custom_call.1} parent=0
    _
  %s6 = ssub.s32 1, %s4
  %s7 = scalar_select 0, %s6, %s4
  $region1: #{tpu_custom_call.1} parent=0
    #allocation4 [shape = 'u8[131072]{0}', space=vmem, size = 0x20000, scoped, tag = 'input window, operand 0']
    #allocation5 [shape = 'u8[131072]{0}', space=vmem, size = 0x20000, scoped, tag = 'input window, operand 1']
    #allocation6 [shape = 'u8[8192]{0}', space=vmem, size = 0x2000, scoped, tag = 'output window, operand 0']
    #allocation7 [shape = 's32[2]{0}', space=sflag, size = 0x8, scoped, tag = 'scoped memory for tpu_custom_call.1']
    %8 = vsyncpa [#allocation7], 0
    %s9 = scalar_lea.sflag [#allocation7], 1
    %10 = vsyncpa %s9, 0
    loop: start=0, step=1, limit=10
    $region2: #{tpu_custom_call.1} parent=1 // loop_pre_header
      _
    $region3: #{tpu_custom_call.1} parent=1 // loop_header
      %s12 = sphi 0, %s16
      %p13 = scmp.ge.s32.totalorder %s12, 10
      %s19 = sphi 0, %s31
      %s20 = sphi 0, %s27
      %s21 = sphi 0, %s19
      %s22 = sphi 0, %s20
      %s23 = sphi 0, %s21
      %s24 = sphi 0, %s22
      %s36 = sphi 0, %s38
      %s39 = sphi 0, %s36
      %s40 = sphi 0, %s39
      %s56 = sphi 0, %s40
      %s64 = sphi 0, %s66
      %s67 = sphi 0, %s64
      %s68 = sphi 0, %s67
      %s84 = sphi 0, %s68
      %s88 = sphi 0, %s88
      %s90 = sphi 0, %s88
      %s91 = sphi 0, %s90
      %s105 = sphi 0, %s91
      %s111 = sphi 0, %s113
      %s114 = sphi 0, %s111
      %s115 = sphi 0, %s114
      %s131 = sphi 0, %s115
    $region4: #{tpu_custom_call.1} parent=1 // loop_header_branch
      %15 = sbr.rel (%p13) target = $region8
    $region5: #{tpu_custom_call.1} parent=1 // loop_body
      %s17 = ssub.s32 %s12, 1
      %s18 = ssub.s32 %s12, 2
      %s25 = sadd.s32 1, %s20
      %p26 = scmp.ge.s32.totalorder %s25, 4
      %s27 = scalar_select %p26, 0, %s25
      %s28 = sadd.s32 1, %s19
      %s29 = scalar_select %p26, %s28, %s19
      %p30 = scmp.ge.s32.totalorder %s29, 2
      %s31 = scalar_select %p30, 0, %s29
      %s32 = ssub.s32 %s19, %s31
      %s33 = ssub.s32 %s20, %s27
      %s34 = sor.u32 %s32, %s33
      %p35 = scmp.eq.s32.totalorder %s34, 0
      %s37 = sadd.s32 %s36, 1
      %s38 = scalar_select %p35, %s36, %s37
      %p41 = pneg %p35
      %p42 = scmp.eq.s32.totalorder %s12, 7
      %p43 = por %p41, %p42
      %p44 = scmp.ne.s32.totalorder %s36, %s39
      %p45 = scmp.eq.s32.totalorder %s12, 0
      %p46 = por %p44, %p45
      %p47 = scmp.ne.s32.totalorder %s36, %s39
      %p48 = scmp.eq.s32.totalorder %s17, 7
      %p49 = por %p47, %p48
      %p50 = scmp.ne.s32.totalorder %s39, %s40
      %p51 = scmp.eq.s32.totalorder %s17, 0
      %p52 = por %p50, %p51
      %p53 = scmp.ne.s32.totalorder %s39, %s40
      %p54 = scmp.eq.s32.totalorder %s18, 7
      %p55 = por %p53, %p54
      %p57 = scmp.ne.s32.totalorder %s40, %s56
      %p58 = scmp.eq.s32.totalorder %s18, 0
      %p59 = por %p57, %p58
      %s60 = ssub.s32 %s19, %s31
      %s61 = ssub.s32 %s20, %s27
      %s62 = sor.u32 %s60, %s61
      %p63 = scmp.eq.s32.totalorder %s62, 0
      %s65 = sadd.s32 %s64, 1
      %s66 = scalar_select %p63, %s64, %s65
      %p69 = pneg %p63
      %p70 = scmp.eq.s32.totalorder %s12, 7
      %p71 = por %p69, %p70
      %p72 = scmp.ne.s32.totalorder %s64, %s67
      %p73 = scmp.eq.s32.totalorder %s12, 0
      %p74 = por %p72, %p73
      %p75 = scmp.ne.s32.totalorder %s64, %s67
      %p76 = scmp.eq.s32.totalorder %s17, 7
      %p77 = por %p75, %p76
      %p78 = scmp.ne.s32.totalorder %s67, %s68
      %p79 = scmp.eq.s32.totalorder %s17, 0
      %p80 = por %p78, %p79
      %p81 = scmp.ne.s32.totalorder %s67, %s68
      %p82 = scmp.eq.s32.totalorder %s18, 7
      %p83 = por %p81, %p82
      %p85 = scmp.ne.s32.totalorder %s68, %s84
      %p86 = scmp.eq.s32.totalorder %s18, 0
      %p87 = por %p85, %p86
      %s89 = sadd.s32 %s88, 1
      %p92 = scmp.eq.s32.totalorder %s12, 7
      %p93 = scmp.ne.s32.totalorder %s88, %s90
      %p94 = scmp.eq.s32.totalorder %s12, 0
      %p95 = por %p93, %p94
      %p96 = scmp.ne.s32.totalorder %s88, %s90
      %p97 = scmp.eq.s32.totalorder %s17, 7
      %p98 = por %p96, %p97
      %p99 = scmp.ne.s32.totalorder %s90, %s91
      %p100 = scmp.eq.s32.totalorder %s17, 0
      %p101 = por %p99, %p100
      %p102 = scmp.ne.s32.totalorder %s90, %s91
      %p103 = scmp.eq.s32.totalorder %s18, 7
      %p104 = por %p102, %p103
      %p106 = scmp.ne.s32.totalorder %s91, %s105
      %p107 = scmp.eq.s32.totalorder %s18, 0
      %p108 = por %p106, %p107
      %s109 = ssub.s32 %s19, %s31
      %p110 = scmp.eq.s32.totalorder %s109, 0
      %s112 = sadd.s32 %s111, 1
      %s113 = scalar_select %p110, %s111, %s112
      %p116 = pneg %p110
      %p117 = scmp.eq.s32.totalorder %s12, 7
      %p118 = por %p116, %p117
      %p119 = scmp.ne.s32.totalorder %s111, %s114
      %p120 = scmp.eq.s32.totalorder %s12, 0
      %p121 = por %p119, %p120
      %p122 = scmp.ne.s32.totalorder %s111, %s114
      %p123 = scmp.eq.s32.totalorder %s17, 7
      %p124 = por %p122, %p123
      %p125 = scmp.ne.s32.totalorder %s114, %s115
      %p126 = scmp.eq.s32.totalorder %s17, 0
      %p127 = por %p125, %p126
      %p128 = scmp.ne.s32.totalorder %s114, %s115
      %p129 = scmp.eq.s32.totalorder %s18, 7
      %p130 = por %p128, %p129
      %p132 = scmp.ne.s32.totalorder %s115, %s131
      %p133 = scmp.eq.s32.totalorder %s18, 0
      %p134 = por %p132, %p133
      %p135 = scmp.le.s32.totalorder 1, %s12
      %p136 = scmp.lt.s32.totalorder %s12, 9
      %p137 = pnand %p135, %p136
      %p138 = pneg %p137
      // Predicated region
      $region9: #{tpu_custom_call.1} parent=5 // pred_check
        _
      $region10: #{tpu_custom_call.1} parent=5 // pred_check_branch
        %140 = sbr.rel (%p137) target = $region12
      $region11: #{tpu_custom_call.1} parent=5 // pred_region
        %s141 = ssub.s32 %s12, 1
        // Predicated region
        $region13: #{tpu_custom_call.1} parent=11 // pred_check
          %p142 = pneg %p101
        $region14: #{tpu_custom_call.1} parent=11 // pred_check_branch
          %144 = sbr.rel (%p142) target = $region16
        $region15: #{tpu_custom_call.1} parent=11 // pred_region
          _
        $region16: #{tpu_custom_call.1} parent=11 // pred_fallthru
          _
      $region12: #{tpu_custom_call.1} parent=5 // pred_fallthru
        _
      %p145 = scmp.lt.s32.totalorder %s12, 8
      // Predicated region
      $region17: #{tpu_custom_call.1} parent=5 // pred_check
        %p146 = pneg %p145
      $region18: #{tpu_custom_call.1} parent=5 // pred_check_branch
        %148 = sbr.rel (%p146) target = $region20
      $region19: #{tpu_custom_call.1} parent=5 // pred_region
        // Predicated region
        $region21: #{tpu_custom_call.1} parent=19 // pred_check
          %p149 = pneg %p46
        $region22: #{tpu_custom_call.1} parent=19 // pred_check_branch
          %151 = sbr.rel (%p149) target = $region24
        $region23: #{tpu_custom_call.1} parent=19 // pred_region
          %s152 = sand.u32 %s36, 1
          %s153 = sand.u32 %s36, 1
          %s154 = smul.addr %s153, 128
          %s155 = scalar_lea.vmem [#allocation4], %s154
          %s156 = smul.u32 8, %s19
          %s157 = smul.u32 2, %s20
          %s158 = smul.addr %s156, 8
          %s159 = sadd.s32 %s157, %s158
          %s160 = smul.addr %s159, 8
          %s161 = scalar_lea.vmem %s0, %s160
          // Predicated region
          $region25: #{tpu_custom_call.1} parent=23 // pred_check
            _
          $region26: #{tpu_custom_call.1} parent=23 // pred_check_branch
            %163 = sbr.rel (0) target = $region28
          $region27: #{tpu_custom_call.1} parent=23 // pred_region
            // Predicated region
            $region29: #{tpu_custom_call.1} parent=27 // pred_check
              _
            $region30: #{tpu_custom_call.1} parent=27 // pred_check_branch
              %165 = sbr.rel (0) target = $region32
            $region31: #{tpu_custom_call.1} parent=27 // pred_region
              // Predicated region
              $region44: #{tpu_custom_call.1} parent=31 // pred_check
                _
              $region45: #{tpu_custom_call.1} parent=31 // pred_check_branch
                %210 = sbr.rel (0) target = $region47
              $region46: #{tpu_custom_call.1} parent=31 // pred_region
                loop: start=0, step=1, limit=1
                $region48: #{tpu_custom_call.1} parent=46 // loop_pre_header
                  _
                $region49: #{tpu_custom_call.1} parent=46 // loop_header
                  %s212 = sphi 0, %s216
                  %p213 = scmp.ge.s32.totalorder %s212, 1
                  %s217 = sphi %s161, %s161
                  %s218 = sphi %s155, %s155
                $region50: #{tpu_custom_call.1} parent=46 // loop_header_branch
                  %215 = sbr.rel (%p213) target = $region54
                $region51: #{tpu_custom_call.1} parent=46 // loop_body
                  %v219 = vld [vmem:[%s217] sm:$0xff]
                  %220 = vst [vmem:[%s218] sm:$0xff] %v219
                  %v221 = vld [vmem:[%s217 + $0x8] sm:$0xff]
                  %222 = vst [vmem:[%s218 + $0x8] sm:$0xff] %v221
                  %v223 = vld [vmem:[%s217 + $0x40] sm:$0xff]
                  %224 = vst [vmem:[%s218 + $0x10] sm:$0xff] %v223
                  %v225 = vld [vmem:[%s217 + $0x48] sm:$0xff]
                  %226 = vst [vmem:[%s218 + $0x18] sm:$0xff] %v225
                  %v227 = vld [vmem:[%s217 + $0x80] sm:$0xff]
                  %228 = vst [vmem:[%s218 + $0x20] sm:$0xff] %v227
                  %v229 = vld [vmem:[%s217 + $0x88] sm:$0xff]
                  %230 = vst [vmem:[%s218 + $0x28] sm:$0xff] %v229
                  %v231 = vld [vmem:[%s217 + $0xc0] sm:$0xff]
                  %232 = vst [vmem:[%s218 + $0x30] sm:$0xff] %v231
                  %v233 = vld [vmem:[%s217 + $0xc8] sm:$0xff]
                  %234 = vst [vmem:[%s218 + $0x38] sm:$0xff] %v233
                  %v235 = vld [vmem:[%s217 + $0x100] sm:$0xff]
                  %236 = vst [vmem:[%s218 + $0x40] sm:$0xff] %v235
                  %v237 = vld [vmem:[%s217 + $0x108] sm:$0xff]
                  %238 = vst [vmem:[%s218 + $0x48] sm:$0xff] %v237
                  %v239 = vld [vmem:[%s217 + $0x140] sm:$0xff]
                  %240 = vst [vmem:[%s218 + $0x50] sm:$0xff] %v239
                  %v241 = vld [vmem:[%s217 + $0x148] sm:$0xff]
                  %242 = vst [vmem:[%s218 + $0x58] sm:$0xff] %v241
                  %v243 = vld [vmem:[%s217 + $0x180] sm:$0xff]
                  %244 = vst [vmem:[%s218 + $0x60] sm:$0xff] %v243
                  %v245 = vld [vmem:[%s217 + $0x188] sm:$0xff]
                  %246 = vst [vmem:[%s218 + $0x68] sm:$0xff] %v245
                  %v247 = vld [vmem:[%s217 + $0x1c0] sm:$0xff]
                  %248 = vst [vmem:[%s218 + $0x70] sm:$0xff] %v247
                  %v249 = vld [vmem:[%s217 + $0x1c8] sm:$0xff]
                  %250 = vst [vmem:[%s218 + $0x78] sm:$0xff] %v249
                $region52: #{tpu_custom_call.1} parent=46 // loop_footer
                  %s216 = sadd.s32 1, %s212
                $region53: #{tpu_custom_call.1} parent=46 // loop_footer_branch
                  %211 = sbr.rel target = $region49
                $region54: #{tpu_custom_call.1} parent=46 // loop_exit
                  _
              $region47: #{tpu_custom_call.1} parent=31 // pred_fallthru
                _
              // Predicated region
              $region55: #{tpu_custom_call.1} parent=31 // pred_check
                _
              $region56: #{tpu_custom_call.1} parent=31 // pred_check_branch
                %252 = sbr.rel target = $region58
              $region57: #{tpu_custom_call.1} parent=31 // pred_region
                _
              $region58: #{tpu_custom_call.1} parent=31 // pred_fallthru
                _
            $region32: #{tpu_custom_call.1} parent=27 // pred_fallthru
              _
            // Predicated region
            $region33: #{tpu_custom_call.1} parent=27 // pred_check
              _
            $region34: #{tpu_custom_call.1} parent=27 // pred_check_branch
              %167 = sbr.rel target = $region36
            $region35: #{tpu_custom_call.1} parent=27 // pred_region
              loop: start=0, step=1, limit=1
              $region37: #{tpu_custom_call.1} parent=35 // loop_pre_header
                _
              $region38: #{tpu_custom_call.1} parent=35 // loop_header
                %s170 = sphi 0, %s174
                %p171 = scmp.ge.s32.totalorder %s170, 1
                %s175 = sphi %s161, %s161
                %s176 = sphi %s155, %s155
              $region39: #{tpu_custom_call.1} parent=35 // loop_header_branch
                %173 = sbr.rel (%p171) target = $region43
              $region40: #{tpu_custom_call.1} parent=35 // loop_body
                %v177 = vld [vmem:[%s175] sm:$0xff]
                %178 = vst [vmem:[%s176] sm:$0xff] %v177
                %v179 = vld [vmem:[%s175 + $0x8] sm:$0xff]
                %180 = vst [vmem:[%s176 + $0x8] sm:$0xff] %v179
                %v181 = vld [vmem:[%s175 + $0x40] sm:$0xff]
                %182 = vst [vmem:[%s176 + $0x10] sm:$0xff] %v181
                %v183 = vld [vmem:[%s175 + $0x48] sm:$0xff]
                %184 = vst [vmem:[%s176 + $0x18] sm:$0xff] %v183
                %v185 = vld [vmem:[%s175 + $0x80] sm:$0xff]
                %186 = vst [vmem:[%s176 + $0x20] sm:$0xff] %v185
                %v187 = vld [vmem:[%s175 + $0x88] sm:$0xff]
                %188 = vst [vmem:[%s176 + $0x28] sm:$0xff] %v187
                %v189 = vld [vmem:[%s175 + $0xc0] sm:$0xff]
                %190 = vst [vmem:[%s176 + $0x30] sm:$0xff] %v189
                %v191 = vld [vmem:[%s175 + $0xc8] sm:$0xff]
                %192 = vst [vmem:[%s176 + $0x38] sm:$0xff] %v191
                %v193 = vld [vmem:[%s175 + $0x100] sm:$0xff]
                %194 = vst [vmem:[%s176 + $0x40] sm:$0xff] %v193
                %v195 = vld [vmem:[%s175 + $0x108] sm:$0xff]
                %196 = vst [vmem:[%s176 + $0x48] sm:$0xff] %v195
                %v197 = vld [vmem:[%s175 + $0x140] sm:$0xff]
                %198 = vst [vmem:[%s176 + $0x50] sm:$0xff] %v197
                %v199 = vld [vmem:[%s175 + $0x148] sm:$0xff]
                %200 = vst [vmem:[%s176 + $0x58] sm:$0xff] %v199
                %v201 = vld [vmem:[%s175 + $0x180] sm:$0xff]
                %202 = vst [vmem:[%s176 + $0x60] sm:$0xff] %v201
                %v203 = vld [vmem:[%s175 + $0x188] sm:$0xff]
                %204 = vst [vmem:[%s176 + $0x68] sm:$0xff] %v203
                %v205 = vld [vmem:[%s175 + $0x1c0] sm:$0xff]
                %206 = vst [vmem:[%s176 + $0x70] sm:$0xff] %v205
                %v207 = vld [vmem:[%s175 + $0x1c8] sm:$0xff]
                %208 = vst [vmem:[%s176 + $0x78] sm:$0xff] %v207
              $region41: #{tpu_custom_call.1} parent=35 // loop_footer
                %s174 = sadd.s32 1, %s170
              $region42: #{tpu_custom_call.1} parent=35 // loop_footer_branch
                %169 = sbr.rel target = $region38
              $region43: #{tpu_custom_call.1} parent=35 // loop_exit
                _
            $region36: #{tpu_custom_call.1} parent=27 // pred_fallthru
              _
          $region28: #{tpu_custom_call.1} parent=23 // pred_fallthru
            _
          %253 = vnop
        $region24: #{tpu_custom_call.1} parent=19 // pred_fallthru
          _
        // Predicated region
        $region59: #{tpu_custom_call.1} parent=19 // pred_check
          %p254 = pneg %p74
        $region60: #{tpu_custom_call.1} parent=19 // pred_check_branch
          %256 = sbr.rel (%p254) target = $region62
        $region61: #{tpu_custom_call.1} parent=19 // pred_region
          %s257 = sand.u32 %s64, 1
          %s258 = sand.u32 %s64, 1
          %s259 = smul.addr %s258, 128
          %s260 = scalar_lea.vmem [#allocation5], %s259
          %s261 = smul.u32 8, %s19
          %s262 = smul.u32 2, %s20
          %s263 = smul.addr %s261, 8
          %s264 = sadd.s32 %s262, %s263
          %s265 = smul.addr %s264, 8
          %s266 = scalar_lea.vmem %s1, %s265
          // Predicated region
          $region63: #{tpu_custom_call.1} parent=61 // pred_check
            _
          $region64: #{tpu_custom_call.1} parent=61 // pred_check_branch
            %268 = sbr.rel (0) target = $region66
          $region65: #{tpu_custom_call.1} parent=61 // pred_region
            // Predicated region
            $region67: #{tpu_custom_call.1} parent=65 // pred_check
              _
            $region68: #{tpu_custom_call.1} parent=65 // pred_check_branch
              %270 = sbr.rel (0) target = $region70
            $region69: #{tpu_custom_call.1} parent=65 // pred_region
              // Predicated region
              $region82: #{tpu_custom_call.1} parent=69 // pred_check
                _
              $region83: #{tpu_custom_call.1} parent=69 // pred_check_branch
                %315 = sbr.rel (0) target = $region85
              $region84: #{tpu_custom_call.1} parent=69 // pred_region
                loop: start=0, step=1, limit=1
                $region86: #{tpu_custom_call.1} parent=84 // loop_pre_header
                  _
                $region87: #{tpu_custom_call.1} parent=84 // loop_header
                  %s317 = sphi 0, %s321
                  %p318 = scmp.ge.s32.totalorder %s317, 1
                  %s322 = sphi %s266, %s266
                  %s323 = sphi %s260, %s260
                $region88: #{tpu_custom_call.1} parent=84 // loop_header_branch
                  %320 = sbr.rel (%p318) target = $region92
                $region89: #{tpu_custom_call.1} parent=84 // loop_body
                  %v324 = vld [vmem:[%s322] sm:$0xff]
                  %325 = vst [vmem:[%s323] sm:$0xff] %v324
                  %v326 = vld [vmem:[%s322 + $0x8] sm:$0xff]
                  %327 = vst [vmem:[%s323 + $0x8] sm:$0xff] %v326
                  %v328 = vld [vmem:[%s322 + $0x40] sm:$0xff]
                  %329 = vst [vmem:[%s323 + $0x10] sm:$0xff] %v328
                  %v330 = vld [vmem:[%s322 + $0x48] sm:$0xff]
                  %331 = vst [vmem:[%s323 + $0x18] sm:$0xff] %v330
                  %v332 = vld [vmem:[%s322 + $0x80] sm:$0xff]
                  %333 = vst [vmem:[%s323 + $0x20] sm:$0xff] %v332
                  %v334 = vld [vmem:[%s322 + $0x88] sm:$0xff]
                  %335 = vst [vmem:[%s323 + $0x28] sm:$0xff] %v334
                  %v336 = vld [vmem:[%s322 + $0xc0] sm:$0xff]
                  %337 = vst [vmem:[%s323 + $0x30] sm:$0xff] %v336
                  %v338 = vld [vmem:[%s322 + $0xc8] sm:$0xff]
                  %339 = vst [vmem:[%s323 + $0x38] sm:$0xff] %v338
                  %v340 = vld [vmem:[%s322 + $0x100] sm:$0xff]
                  %341 = vst [vmem:[%s323 + $0x40] sm:$0xff] %v340
                  %v342 = vld [vmem:[%s322 + $0x108] sm:$0xff]
                  %343 = vst [vmem:[%s323 + $0x48] sm:$0xff] %v342
                  %v344 = vld [vmem:[%s322 + $0x140] sm:$0xff]
                  %345 = vst [vmem:[%s323 + $0x50] sm:$0xff] %v344
                  %v346 = vld [vmem:[%s322 + $0x148] sm:$0xff]
                  %347 = vst [vmem:[%s323 + $0x58] sm:$0xff] %v346
                  %v348 = vld [vmem:[%s322 + $0x180] sm:$0xff]
                  %349 = vst [vmem:[%s323 + $0x60] sm:$0xff] %v348
                  %v350 = vld [vmem:[%s322 + $0x188] sm:$0xff]
                  %351 = vst [vmem:[%s323 + $0x68] sm:$0xff] %v350
                  %v352 = vld [vmem:[%s322 + $0x1c0] sm:$0xff]
                  %353 = vst [vmem:[%s323 + $0x70] sm:$0xff] %v352
                  %v354 = vld [vmem:[%s322 + $0x1c8] sm:$0xff]
                  %355 = vst [vmem:[%s323 + $0x78] sm:$0xff] %v354
                $region90: #{tpu_custom_call.1} parent=84 // loop_footer
                  %s321 = sadd.s32 1, %s317
                $region91: #{tpu_custom_call.1} parent=84 // loop_footer_branch
                  %316 = sbr.rel target = $region87
                $region92: #{tpu_custom_call.1} parent=84 // loop_exit
                  _
              $region85: #{tpu_custom_call.1} parent=69 // pred_fallthru
                _
              // Predicated region
              $region93: #{tpu_custom_call.1} parent=69 // pred_check
                _
              $region94: #{tpu_custom_call.1} parent=69 // pred_check_branch
                %357 = sbr.rel target = $region96
              $region95: #{tpu_custom_call.1} parent=69 // pred_region
                _
              $region96: #{tpu_custom_call.1} parent=69 // pred_fallthru
                _
            $region70: #{tpu_custom_call.1} parent=65 // pred_fallthru
              _
            // Predicated region
            $region71: #{tpu_custom_call.1} parent=65 // pred_check
              _
            $region72: #{tpu_custom_call.1} parent=65 // pred_check_branch
              %272 = sbr.rel target = $region74
            $region73: #{tpu_custom_call.1} parent=65 // pred_region
              loop: start=0, step=1, limit=1
              $region75: #{tpu_custom_call.1} parent=73 // loop_pre_header
                _
              $region76: #{tpu_custom_call.1} parent=73 // loop_header
                %s275 = sphi 0, %s279
                %p276 = scmp.ge.s32.totalorder %s275, 1
                %s280 = sphi %s266, %s266
                %s281 = sphi %s260, %s260
              $region77: #{tpu_custom_call.1} parent=73 // loop_header_branch
                %278 = sbr.rel (%p276) target = $region81
              $region78: #{tpu_custom_call.1} parent=73 // loop_body
                %v282 = vld [vmem:[%s280] sm:$0xff]
                %283 = vst [vmem:[%s281] sm:$0xff] %v282
                %v284 = vld [vmem:[%s280 + $0x8] sm:$0xff]
                %285 = vst [vmem:[%s281 + $0x8] sm:$0xff] %v284
                %v286 = vld [vmem:[%s280 + $0x40] sm:$0xff]
                %287 = vst [vmem:[%s281 + $0x10] sm:$0xff] %v286
                %v288 = vld [vmem:[%s280 + $0x48] sm:$0xff]
                %289 = vst [vmem:[%s281 + $0x18] sm:$0xff] %v288
                %v290 = vld [vmem:[%s280 + $0x80] sm:$0xff]
                %291 = vst [vmem:[%s281 + $0x20] sm:$0xff] %v290
                %v292 = vld [vmem:[%s280 + $0x88] sm:$0xff]
                %293 = vst [vmem:[%s281 + $0x28] sm:$0xff] %v292
                %v294 = vld [vmem:[%s280 + $0xc0] sm:$0xff]
                %295 = vst [vmem:[%s281 + $0x30] sm:$0xff] %v294
                %v296 = vld [vmem:[%s280 + $0xc8] sm:$0xff]
                %297 = vst [vmem:[%s281 + $0x38] sm:$0xff] %v296
                %v298 = vld [vmem:[%s280 + $0x100] sm:$0xff]
                %299 = vst [vmem:[%s281 + $0x40] sm:$0xff] %v298
                %v300 = vld [vmem:[%s280 + $0x108] sm:$0xff]
                %301 = vst [vmem:[%s281 + $0x48] sm:$0xff] %v300
                %v302 = vld [vmem:[%s280 + $0x140] sm:$0xff]
                %303 = vst [vmem:[%s281 + $0x50] sm:$0xff] %v302
                %v304 = vld [vmem:[%s280 + $0x148] sm:$0xff]
                %305 = vst [vmem:[%s281 + $0x58] sm:$0xff] %v304
                %v306 = vld [vmem:[%s280 + $0x180] sm:$0xff]
                %307 = vst [vmem:[%s281 + $0x60] sm:$0xff] %v306
                %v308 = vld [vmem:[%s280 + $0x188] sm:$0xff]
                %309 = vst [vmem:[%s281 + $0x68] sm:$0xff] %v308
                %v310 = vld [vmem:[%s280 + $0x1c0] sm:$0xff]
                %311 = vst [vmem:[%s281 + $0x70] sm:$0xff] %v310
                %v312 = vld [vmem:[%s280 + $0x1c8] sm:$0xff]
                %313 = vst [vmem:[%s281 + $0x78] sm:$0xff] %v312
              $region79: #{tpu_custom_call.1} parent=73 // loop_footer
                %s279 = sadd.s32 1, %s275
              $region80: #{tpu_custom_call.1} parent=73 // loop_footer_branch
                %274 = sbr.rel target = $region76
              $region81: #{tpu_custom_call.1} parent=73 // loop_exit
                _
            $region74: #{tpu_custom_call.1} parent=65 // pred_fallthru
              _
          $region66: #{tpu_custom_call.1} parent=61 // pred_fallthru
            _
          %358 = vnop
        $region62: #{tpu_custom_call.1} parent=19 // pred_fallthru
          _
      $region20: #{tpu_custom_call.1} parent=5 // pred_fallthru
        _
      %p359 = scmp.le.s32.totalorder 1, %s12
      %p360 = scmp.lt.s32.totalorder %s12, 9
      %p361 = pnand %p359, %p360
      %p362 = pneg %p361
      // Predicated region
      $region97: #{tpu_custom_call.1} parent=5 // pred_check
        _
      $region98: #{tpu_custom_call.1} parent=5 // pred_check_branch
        %364 = sbr.rel (%p361) target = $region100
      $region99: #{tpu_custom_call.1} parent=5 // pred_region
        %s365 = ssub.s32 %s12, 1
        %s366 = sand.u32 %s39, 1
        %s367 = sand.u32 %s39, 1
        %s368 = smul.addr %s367, 128
        %s369 = scalar_lea.vmem [#allocation4], %s368
        // Predicated region
        $region101: #{tpu_custom_call.1} parent=99 // pred_check
          %p370 = pneg %p52
        $region102: #{tpu_custom_call.1} parent=99 // pred_check_branch
          %372 = sbr.rel (%p370) target = $region104
        $region103: #{tpu_custom_call.1} parent=99 // pred_region
          _
        $region104: #{tpu_custom_call.1} parent=99 // pred_fallthru
          _
        %s373 = sand.u32 %s67, 1
        %s374 = sand.u32 %s67, 1
        %s375 = smul.addr %s374, 128
        %s376 = scalar_lea.vmem [#allocation5], %s375
        // Predicated region
        $region105: #{tpu_custom_call.1} parent=99 // pred_check
          %p377 = pneg %p80
        $region106: #{tpu_custom_call.1} parent=99 // pred_check_branch
          %379 = sbr.rel (%p377) target = $region108
        $region107: #{tpu_custom_call.1} parent=99 // pred_region
          _
        $region108: #{tpu_custom_call.1} parent=99 // pred_fallthru
          _
        %s380 = sand.u32 %s39, 1
        %s381 = sand.u32 %s39, 1
        %s382 = smul.addr %s381, 128
        %s383 = scalar_lea.vmem [#allocation4], %s382
        %p384 = pneg %p52
        %p385 = pneg %p49
        %s386 = sand.u32 %s67, 1
        %s387 = sand.u32 %s67, 1
        %s388 = smul.addr %s387, 128
        %s389 = scalar_lea.vmem [#allocation5], %s388
        %p390 = pneg %p80
        %p391 = pneg %p77
        %p392 = pneg %p101
        %p393 = pneg %p98
        %p394 = pneg %p127
        %p395 = pneg %p124
        %s396 = sand.u32 %s114, 1
        %s397 = scalar_lea.sflag [#allocation7], %s396
        %s398 = sand.u32 %s114, 1
        %s399 = smul.addr %s398, 8
        %s400 = scalar_lea.vmem [#allocation6], %s399
        %s401 = smul.u32 8, %s21
        %s402 = smul.u32 2, %s22
        %s403 = smul.u32 8, %s21
        %s404 = smul.u32 2, %s22
        %p405 = scmp.eq.s32.totalorder %s22, 0
        // Predicated region
        $region109: #{tpu_custom_call.1} parent=99 // pred_check
          %p406 = pneg %p405
        $region110: #{tpu_custom_call.1} parent=99 // pred_check_branch
          %408 = sbr.rel (%p406) target = $region112
        $region111: #{tpu_custom_call.1} parent=99 // pred_region
          %409 = vst [vmem:[#allocation2] sm:$0xff] 0.0
          %vm410 = vcmask 7168
          %411 = vst.msk [vmem:[#allocation3] sm:$0xff] %vm410, 0.0
        $region112: #{tpu_custom_call.1} parent=99 // pred_fallthru
          _
        %v412 = vld [vmem:[%s369] sm:$0xff]
        %v413 = vld [vmem:[%s369 + $0x8] sm:$0xff]
        %v414 = vld [vmem:[%s369 + $0x10] sm:$0xff]
        %v415 = vld [vmem:[%s369 + $0x18] sm:$0xff]
        %v416 = vld [vmem:[%s369 + $0x20] sm:$0xff]
        %v417 = vld [vmem:[%s369 + $0x28] sm:$0xff]
        %v418 = vld [vmem:[%s369 + $0x30] sm:$0xff]
        %v419 = vld [vmem:[%s369 + $0x38] sm:$0xff]
        %v420 = vld [vmem:[%s369 + $0x40] sm:$0xff]
        %v421 = vld [vmem:[%s369 + $0x48] sm:$0xff]
        %v422 = vld [vmem:[%s369 + $0x50] sm:$0xff]
        %v423 = vld [vmem:[%s369 + $0x58] sm:$0xff]
        %v424 = vld [vmem:[%s369 + $0x60] sm:$0xff]
        %v425 = vld [vmem:[%s369 + $0x68] sm:$0xff]
        %v426 = vld [vmem:[%s369 + $0x70] sm:$0xff]
        %v427 = vld [vmem:[%s369 + $0x78] sm:$0xff]
        %v428 = vld [vmem:[%s376] sm:$0xff]
        %v429 = vld [vmem:[%s376 + $0x8] sm:$0xff]
        %v430 = vld [vmem:[%s376 + $0x10] sm:$0xff]
        %v431 = vld [vmem:[%s376 + $0x18] sm:$0xff]
        %v432 = vld [vmem:[%s376 + $0x20] sm:$0xff]
        %v433 = vld [vmem:[%s376 + $0x28] sm:$0xff]
        %v434 = vld [vmem:[%s376 + $0x30] sm:$0xff]
        %v435 = vld [vmem:[%s376 + $0x38] sm:$0xff]
        %v436 = vld [vmem:[%s376 + $0x40] sm:$0xff]
        %v437 = vld [vmem:[%s376 + $0x48] sm:$0xff]
        %v438 = vld [vmem:[%s376 + $0x50] sm:$0xff]
        %v439 = vld [vmem:[%s376 + $0x58] sm:$0xff]
        %v440 = vld [vmem:[%s376 + $0x60] sm:$0xff]
        %v441 = vld [vmem:[%s376 + $0x68] sm:$0xff]
        %v442 = vld [vmem:[%s376 + $0x70] sm:$0xff]
        %v443 = vld [vmem:[%s376 + $0x78] sm:$0xff]
        %v444 = vld [vmem:[#allocation2] sm:$0xff]
        %446 = vset.pattern.permute.xlu0 0
        %447 = vperm.xlu0 %446, %v428
        %v448 = vpop.permute.xlu0 %447
        %451 = vset.pattern.permute.xlu0 0
        %452 = vperm.xlu0 %451, %v429
        %v453 = vpop.permute.xlu0 %452
        %456 = vset.pattern.permute.xlu0 0
        %457 = vperm.xlu0 %456, %v430
        %v458 = vpop.permute.xlu0 %457
        %461 = vset.pattern.permute.xlu0 0
        %462 = vperm.xlu0 %461, %v431
        %v463 = vpop.permute.xlu0 %462
        %466 = vset.pattern.permute.xlu0 0
        %467 = vperm.xlu0 %466, %v432
        %v468 = vpop.permute.xlu0 %467
        %471 = vset.pattern.permute.xlu0 0
        %472 = vperm.xlu0 %471, %v433
        %v473 = vpop.permute.xlu0 %472
        %476 = vset.pattern.permute.xlu0 0
        %477 = vperm.xlu0 %476, %v434
        %v478 = vpop.permute.xlu0 %477
        %481 = vset.pattern.permute.xlu0 0
        %482 = vperm.xlu0 %481, %v435
        %v483 = vpop.permute.xlu0 %482
        %486 = vset.pattern.permute.xlu0 0
        %487 = vperm.xlu0 %486, %v436
        %v488 = vpop.permute.xlu0 %487
        %491 = vset.pattern.permute.xlu0 0
        %492 = vperm.xlu0 %491, %v437
        %v493 = vpop.permute.xlu0 %492
        %496 = vset.pattern.permute.xlu0 0
        %497 = vperm.xlu0 %496, %v438
        %v498 = vpop.permute.xlu0 %497
        %501 = vset.pattern.permute.xlu0 0
        %502 = vperm.xlu0 %501, %v439
        %v503 = vpop.permute.xlu0 %502
        %506 = vset.pattern.permute.xlu0 0
        %507 = vperm.xlu0 %506, %v440
        %v508 = vpop.permute.xlu0 %507
        %511 = vset.pattern.permute.xlu0 0
        %512 = vperm.xlu0 %511, %v441
        %v513 = vpop.permute.xlu0 %512
        %516 = vset.pattern.permute.xlu0 0
        %517 = vperm.xlu0 %516, %v442
        %v518 = vpop.permute.xlu0 %517
        %521 = vset.pattern.permute.xlu0 0
        %522 = vperm.xlu0 %521, %v443
        %v523 = vpop.permute.xlu0 %522
        %v525 = vmul.f32 %v412, %v448
        %v526 = vmul.f32 %v413, %v453
        %v527 = vmul.f32 %v414, %v458
        %v528 = vmul.f32 %v415, %v463
        %v529 = vmul.f32 %v416, %v468
        %v530 = vmul.f32 %v417, %v473
        %v531 = vmul.f32 %v418, %v478
        %v532 = vmul.f32 %v419, %v483
        %v533 = vmul.f32 %v420, %v488
        %v534 = vmul.f32 %v421, %v493
        %v535 = vmul.f32 %v422, %v498
        %v536 = vmul.f32 %v423, %v503
        %v537 = vmul.f32 %v424, %v508
        %v538 = vmul.f32 %v425, %v513
        %v539 = vmul.f32 %v426, %v518
        %v540 = vmul.f32 %v427, %v523
        %v541 = vadd.f32 %v525, %v526
        %v542 = vrot.slane %v541, 4
        %v543 = vadd.f32 %v541, %v542
        %v544 = vrot.slane %v543, 2
        %v545 = vadd.f32 %v543, %v544
        %v546 = vrot.slane %v545, 1
        %v547 = vadd.f32 %v545, %v546
        %v548 = vadd.f32 %v527, %v528
        %v549 = vrot.slane %v548, 4
        %v550 = vadd.f32 %v548, %v549
        %v551 = vrot.slane %v550, 2
        %v552 = vadd.f32 %v550, %v551
        %v553 = vrot.slane %v552, 1
        %v554 = vadd.f32 %v552, %v553
        %v555 = vadd.f32 %v529, %v530
        %v556 = vrot.slane %v555, 4
        %v557 = vadd.f32 %v555, %v556
        %v558 = vrot.slane %v557, 2
        %v559 = vadd.f32 %v557, %v558
        %v560 = vrot.slane %v559, 1
        %v561 = vadd.f32 %v559, %v560
        %v562 = vadd.f32 %v531, %v532
        %v563 = vrot.slane %v562, 4
        %v564 = vadd.f32 %v562, %v563
        %v565 = vrot.slane %v564, 2
        %v566 = vadd.f32 %v564, %v565
        %v567 = vrot.slane %v566, 1
        %v568 = vadd.f32 %v566, %v567
        %v569 = vadd.f32 %v533, %v534
        %v570 = vrot.slane %v569, 4
        %v571 = vadd.f32 %v569, %v570
        %v572 = vrot.slane %v571, 2
        %v573 = vadd.f32 %v571, %v572
        %v574 = vrot.slane %v573, 1
        %v575 = vadd.f32 %v573, %v574
        %v576 = vadd.f32 %v535, %v536
        %v577 = vrot.slane %v576, 4
        %v578 = vadd.f32 %v576, %v577
        %v579 = vrot.slane %v578, 2
        %v580 = vadd.f32 %v578, %v579
        %v581 = vrot.slane %v580, 1
        %v582 = vadd.f32 %v580, %v581
        %v583 = vadd.f32 %v537, %v538
        %v584 = vrot.slane %v583, 4
        %v585 = vadd.f32 %v583, %v584
        %v586 = vrot.slane %v585, 2
        %v587 = vadd.f32 %v585, %v586
        %v588 = vrot.slane %v587, 1
        %v589 = vadd.f32 %v587, %v588
        %v590 = vadd.f32 %v539, %v540
        %v591 = vrot.slane %v590, 4
        %v592 = vadd.f32 %v590, %v591
        %v593 = vrot.slane %v592, 2
        %v594 = vadd.f32 %v592, %v593
        %v595 = vrot.slane %v594, 1
        %v596 = vadd.f32 %v594, %v595
        %vm605 = vcmask 1041409
        %v606 = vsel %vm605, %v554, %v547
        %vm607 = vcmask 1042434
        %v608 = vsel %vm607, %v561, %v606
        %vm609 = vcmask 1043459
        %v610 = vsel %vm609, %v568, %v608
        %vm611 = vcmask 1044484
        %v612 = vsel %vm611, %v575, %v610
        %vm613 = vcmask 1045509
        %v614 = vsel %vm613, %v582, %v612
        %vm615 = vcmask 1046534
        %v616 = vsel %vm615, %v589, %v614
        %vm617 = vcmask 1047559
        %v618 = vsel %vm617, %v596, %v616
        %v620 = vadd.f32 %v444, %v618
        %621 = vst [vmem:[#allocation2] sm:$0xff] %v620
        %v622 = vld [vmem:[#allocation3] sm:$0xff]
        %vm623 = vcmask 7168
        %v624 = vsel %vm623, %v428, 0.0
        %v625 = vsel %vm623, %v429, 0.0
        %v626 = vadd.f32 %v624, %v625
        %v627 = vrot.slane %v626, 4
        %v628 = vadd.f32 %v626, %v627
        %v629 = vrot.slane %v628, 2
        %v630 = vadd.f32 %v628, %v629
        %v631 = vrot.slane %v630, 1
        %v632 = vadd.f32 %v630, %v631
        %v633 = vsel %vm623, %v430, 0.0
        %v634 = vsel %vm623, %v431, 0.0
        %v635 = vadd.f32 %v633, %v634
        %v636 = vrot.slane %v635, 4
        %v637 = vadd.f32 %v635, %v636
        %v638 = vrot.slane %v637, 2
        %v639 = vadd.f32 %v637, %v638
        %v640 = vrot.slane %v639, 1
        %v641 = vadd.f32 %v639, %v640
        %v642 = vsel %vm623, %v432, 0.0
        %v643 = vsel %vm623, %v433, 0.0
        %v644 = vadd.f32 %v642, %v643
        %v645 = vrot.slane %v644, 4
        %v646 = vadd.f32 %v644, %v645
        %v647 = vrot.slane %v646, 2
        %v648 = vadd.f32 %v646, %v647
        %v649 = vrot.slane %v648, 1
        %v650 = vadd.f32 %v648, %v649
        %v651 = vsel %vm623, %v434, 0.0
        %v652 = vsel %vm623, %v435, 0.0
        %v653 = vadd.f32 %v651, %v652
        %v654 = vrot.slane %v653, 4
        %v655 = vadd.f32 %v653, %v654
        %v656 = vrot.slane %v655, 2
        %v657 = vadd.f32 %v655, %v656
        %v658 = vrot.slane %v657, 1
        %v659 = vadd.f32 %v657, %v658
        %v660 = vsel %vm623, %v436, 0.0
        %v661 = vsel %vm623, %v437, 0.0
        %v662 = vadd.f32 %v660, %v661
        %v663 = vrot.slane %v662, 4
        %v664 = vadd.f32 %v662, %v663
        %v665 = vrot.slane %v664, 2
        %v666 = vadd.f32 %v664, %v665
        %v667 = vrot.slane %v666, 1
        %v668 = vadd.f32 %v666, %v667
        %v669 = vsel %vm623, %v438, 0.0
        %v670 = vsel %vm623, %v439, 0.0
        %v671 = vadd.f32 %v669, %v670
        %v672 = vrot.slane %v671, 4
        %v673 = vadd.f32 %v671, %v672
        %v674 = vrot.slane %v673, 2
        %v675 = vadd.f32 %v673, %v674
        %v676 = vrot.slane %v675, 1
        %v677 = vadd.f32 %v675, %v676
        %v678 = vsel %vm623, %v440, 0.0
        %v679 = vsel %vm623, %v441, 0.0
        %v680 = vadd.f32 %v678, %v679
        %v681 = vrot.slane %v680, 4
        %v682 = vadd.f32 %v680, %v681
        %v683 = vrot.slane %v682, 2
        %v684 = vadd.f32 %v682, %v683
        %v685 = vrot.slane %v684, 1
        %v686 = vadd.f32 %v684, %v685
        %v687 = vsel %vm623, %v442, 0.0
        %v688 = vsel %vm623, %v443, 0.0
        %v689 = vadd.f32 %v687, %v688
        %v690 = vrot.slane %v689, 4
        %v691 = vadd.f32 %v689, %v690
        %v692 = vrot.slane %v691, 2
        %v693 = vadd.f32 %v691, %v692
        %v694 = vrot.slane %v693, 1
        %v695 = vadd.f32 %v693, %v694
        %v704 = vsel %vm605, %v641, %v632
        %v705 = vsel %vm607, %v650, %v704
        %v706 = vsel %vm609, %v659, %v705
        %v707 = vsel %vm611, %v668, %v706
        %v708 = vsel %vm613, %v677, %v707
        %v709 = vsel %vm615, %v686, %v708
        %v710 = vsel %vm617, %v695, %v709
        %v712 = vadd.f32 %v622, %v710
        %713 = vst.msk [vmem:[#allocation3] sm:$0xff] %vm623, %v712
        %p714 = scmp.eq.s32.totalorder %s22, 3
        // Predicated region
        $region113: #{tpu_custom_call.1} parent=99 // pred_check
          %p715 = pneg %p714
        $region114: #{tpu_custom_call.1} parent=99 // pred_check_branch
          %717 = sbr.rel (%p715) target = $region116
        $region115: #{tpu_custom_call.1} parent=99 // pred_region
          %v718 = vld [vmem:[#allocation2] sm:$0xff]
          %v719 = vld [vmem:[%s2] sm:$0xff]
          %v720 = vld [vmem:[%s2 + $0x8] sm:$0xff]
          %721 = vmatprep.subr.mxu0 0.0
          %722 = vmatpush1.xpose.msra.mxu0 %v719
          %723 = vmatprep.subr.mxu0 0.0
          %724 = vmatpush1.xpose.msra.mxu0 %v720
          %725 = vmatprep.subr.mxu0 0.0
          %726 = vmatpush1.xpose.msra.mxu0 0.0
          %727 = vmatprep.subr.mxu0 0.0
          %728 = vmatpush1.xpose.msra.mxu0 0.0
          %729 = vmatprep.subr.mxu0 0.0
          %730 = vmatpush1.xpose.msra.mxu0 0.0
          %731 = vmatprep.subr.mxu0 0.0
          %732 = vmatpush1.xpose.msra.mxu0 0.0
          %733 = vmatprep.subr.mxu0 0.0
          %734 = vmatpush1.xpose.msra.mxu0 0.0
          %735 = vmatprep.subr.mxu0 0.0
          %736 = vmatpush1.xpose.msra.mxu0 0.0
          %737 = vmatprep.subr.mxu0 0.0
          %738 = vmatpush1.xpose.msra.mxu0 0.0
          %739 = vmatprep.subr.mxu0 0.0
          %740 = vmatpush1.xpose.msra.mxu0 0.0
          %741 = vmatprep.subr.mxu0 0.0
          %742 = vmatpush1.xpose.msra.mxu0 0.0
          %743 = vmatprep.subr.mxu0 0.0
          %744 = vmatpush1.xpose.msra.mxu0 0.0
          %745 = vmatprep.subr.mxu0 0.0
          %746 = vmatpush1.xpose.msra.mxu0 0.0
          %747 = vmatprep.subr.mxu0 0.0
          %748 = vmatpush1.xpose.msra.mxu0 0.0
          %749 = vmatprep.subr.mxu0 0.0
          %750 = vmatpush1.xpose.msra.mxu0 0.0
          %751 = vmatprep.subr.mxu0 0.0
          %752 = vmatpush1.xpose.msra.mxu0 0.0
          %753 = vmatprep.subr.mxu0 0.0
          %754 = vmatpush1.xpose.msra.mxu0 0.0
          %755 = vmatprep.subr.mxu0 0.0
          %756 = vmatpush1.xpose.msra.mxu0 0.0
          %757 = vmatprep.subr.mxu0 0.0
          %758 = vmatpush1.xpose.msra.mxu0 0.0
          %759 = vmatprep.subr.mxu0 0.0
          %760 = vmatpush1.xpose.msra.mxu0 0.0
          %761 = vmatprep.subr.mxu0 0.0
          %762 = vmatpush1.xpose.msra.mxu0 0.0
          %763 = vmatprep.subr.mxu0 0.0
          %764 = vmatpush1.xpose.msra.mxu0 0.0
          %765 = vmatprep.subr.mxu0 0.0
          %766 = vmatpush1.xpose.msra.mxu0 0.0
          %767 = vmatprep.subr.mxu0 0.0
          %768 = vmatpush1.xpose.msra.mxu0 0.0
          %769 = vmatprep.subr.mxu0 0.0
          %770 = vmatpush1.xpose.msra.mxu0 0.0
          %771 = vmatprep.subr.mxu0 0.0
          %772 = vmatpush1.xpose.msra.mxu0 0.0
          %773 = vmatprep.subr.mxu0 0.0
          %774 = vmatpush1.xpose.msra.mxu0 0.0
          %775 = vmatprep.subr.mxu0 0.0
          %776 = vmatpush1.xpose.msra.mxu0 0.0
          %777 = vmatprep.subr.mxu0 0.0
          %778 = vmatpush1.xpose.msra.mxu0 0.0
          %779 = vmatprep.subr.mxu0 0.0
          %780 = vmatpush1.xpose.msra.mxu0 0.0
          %781 = vmatprep.subr.mxu0 0.0
          %782 = vmatpush1.xpose.msra.mxu0 0.0
          %783 = vmatprep.subr.mxu0 0.0
          %784 = vmatpush1.xpose.msra.mxu0 0.0
          %785 = vmatprep.mubr.f32.mxu0 0.0
          %786 = vmatmul.mubr.f32.gmra.mrb[0].mxu0 %v718
          %v787 = vpop.f32.mrb[0].mxu0
          %v788 = vadd.f32 0.0, %v787
          %v789 = vpop.f32.mrb[0].mxu0
          %790 = vdwg.mxu0
          %v791 = vld [vmem:[#allocation3] sm:$0xff]
          %v792 = vrcp.pop %v791
          %794 = vset.pattern.permute.xlu0 0
          %795 = vperm.xlu0 %794, %v792
          %v796 = vpop.permute.xlu0 %795
          %v798 = vmul.f32 %v788, %v796
          %vm799 = vcmask 130048
          %800 = vst.msk [vmem:[%s400] sm:$0xff] %vm799, %v798
        $region116: #{tpu_custom_call.1} parent=99 // pred_fallthru
          _
        %s801 = sand.u32 %s114, 1
        %s802 = scalar_lea.sflag [#allocation7], %s801
        %s803 = sand.u32 %s114, 1
        %s804 = smul.addr %s803, 8
        %s805 = scalar_lea.vmem [#allocation6], %s804
        // Predicated region
        $region117: #{tpu_custom_call.1} parent=99 // pred_check
          %p806 = pneg %p124
        $region118: #{tpu_custom_call.1} parent=99 // pred_check_branch
          %808 = sbr.rel (%p806) target = $region120
        $region119: #{tpu_custom_call.1} parent=99 // pred_region
          %s810 = ssub.s32 128, 128
          %811 = vsyncadd %s802, %s810
          %s812 = smul.addr %s21, 128
          %s813 = scalar_lea.hbm %s3, %s812
          %s815 = sshll.u32 %s805, 4
          %s816 = int_to_ptr.vmem [resolvable:$true] %s815
          %818 = dma.vmem_to_hbm [thread:$0]  %s816, 128, %s813, %s802
        $region120: #{tpu_custom_call.1} parent=99 // pred_fallthru
          _
      $region100: #{tpu_custom_call.1} parent=5 // pred_fallthru
        _
      %p819 = scmp.le.s32.totalorder 2, %s12
      // Predicated region
      $region121: #{tpu_custom_call.1} parent=5 // pred_check
        %p820 = pneg %p819
      $region122: #{tpu_custom_call.1} parent=5 // pred_check_branch
        %822 = sbr.rel (%p820) target = $region124
      $region123: #{tpu_custom_call.1} parent=5 // pred_region
        %s823 = ssub.s32 %s12, 2
        // Predicated region
        $region125: #{tpu_custom_call.1} parent=123 // pred_check
          %p824 = pneg %p130
        $region126: #{tpu_custom_call.1} parent=123 // pred_check_branch
          %826 = sbr.rel (%p824) target = $region128
        $region127: #{tpu_custom_call.1} parent=123 // pred_region
          %s827 = sand.u32 %s115, 1
          %s828 = scalar_lea.sflag [#allocation7], %s827
          %s829 = sand.u32 %s115, 1
          %s830 = smul.addr %s829, 8
          %s831 = scalar_lea.vmem [#allocation6], %s830
          %832 = dma.done %s828, 128
        $region128: #{tpu_custom_call.1} parent=123 // pred_fallthru
          _
      $region124: #{tpu_custom_call.1} parent=5 // pred_fallthru
        _
    $region6: #{tpu_custom_call.1} parent=1 // loop_footer
      %s16 = sadd.s32 1, %s12
    $region7: #{tpu_custom_call.1} parent=1 // loop_footer_branch
      %11 = sbr.rel target = $region3
    $region8: #{tpu_custom_call.1} parent=1 // loop_exit
      _
    %833 = vsyncpa [#allocation7], 1
    %s834 = scalar_lea.sflag [#allocation7], 1
    %835 = vsyncpa %s834, 1

</llo_original>
